<compile_context>
chip_gen: v7x
topology: tpu7x:2x2x1
jax: 0.10.0
libtpu: 0.0.40
codegen_flags: <defaults>
</compile_context>

<pallas_src>
import jax
import jax.numpy as jnp
import numpy as np
from jax.experimental import pallas as pl
from jax.experimental.pallas import tpu as pltpu

# Module "constructor" arguments (compile-time constants, no learnable params).
GRAD = 1                     # only the configured grad order 1 is implemented
BOUNDARY_AWARENESS = True
BOUNDARY_ALPHA = 10.0

# TODO(synk): GRAD == 2 not implemented -- the original module's grad=2 +
# boundary_awareness=True path is ill-defined (W-1 vs W-2 broadcast mismatch).
assert GRAD == 1, "only grad=1 is implemented"


def _choose_row_tile(H, row_bytes, budget=12 << 20):
    """Largest TH that divides H, is a multiple of 8 and fits the VMEM budget."""
    if H * row_bytes <= budget:
        return H
    cands = [th for th in range(8, H, 8) if H % th == 0]
    fitting = [th for th in cands if th * row_bytes <= budget]
    if fitting:
        return max(fitting)
    return min(cands) if cands else H


def spatial_smooth_forward(flow, image):
    B, C, H, W = flow.shape
    Ci = image.shape[1]

    row_bytes = 4 * (C + Ci) * W
    TH = _choose_row_tile(H, row_bytes)
    T = H // TH

    # One halo row per H-tile: the first row of the next tile; the last tile
    # gets its own last row so its seam difference is exactly zero.
    halo_rows = np.minimum((np.arange(T) + 1) * TH, H - 1)
    flow_halo = jnp.transpose(flow[:, :, halo_rows, :], (0, 2, 1, 3))
    flow_halo = flow_halo.reshape(B, T, C, 1, W)
    img_halo = jnp.transpose(image[:, :, halo_rows, :], (0, 2, 1, 3))
    img_halo = img_halo.reshape(B, T, Ci, 1, W)

    def kernel(flow_ref, fhalo_ref, image_ref, ihalo_ref, out_ref):
        t = pl.program_id(1)

        @pl.when(t == 0)
        def _init():
            out_ref[...] = jnp.zeros_like(out_ref)

        f = flow_ref[...].astype(jnp.float32)        # (C, TH, W)
        fh = fhalo_ref[...].astype(jnp.float32)      # (C, 1, W)

        # ---- x direction (within rows; independent of the H tiling) ----
        dx = f[:, :, 1:] - f[:, :, :-1]              # (C, TH, W-1)
        fx = jnp.sum(jnp.abs(dx), axis=0)            # (TH, W-1)  channel sum

        # ---- y direction: rows inside the tile + the halo seam row ----
        dy = f[:, 1:, :] - f[:, :-1, :]              # (C, TH-1, W)
        dy_seam = fh - f[:, TH - 1:TH, :]            # (C, 1, W)
        fy = jnp.sum(jnp.abs(dy), axis=0)            # (TH-1, W)
        fy_seam = jnp.sum(jnp.abs(dy_seam), axis=0)  # (1, W)

        if BOUNDARY_AWARENESS:
            img = image_ref[...].astype(jnp.float32)   # (Ci, TH, W)
            ih = ihalo_ref[...].astype(jnp.float32)    # (Ci, 1, W)
            gdx = img[:, :, 1:] - img[:, :, :-1]
            wx = jnp.exp(-BOUNDARY_ALPHA *
                         jnp.mean(jnp.abs(gdx), axis=0))            # (TH, W-1)
            gdy = img[:, 1:, :] - img[:, :-1, :]
            gdy_seam = ih - img[:, TH - 1:TH, :]
            wy = jnp.exp(-BOUNDARY_ALPHA *
                         jnp.mean(jnp.abs(gdy), axis=0))            # (TH-1, W)
            wy_seam = jnp.exp(-BOUNDARY_ALPHA *
                              jnp.mean(jnp.abs(gdy_seam), axis=0))  # (1, W)
            # Boundary weight applied AFTER the channel sum (C-fold fewer muls).
            lx = wx * fx
            ly = wy * fy
            ly_seam = wy_seam * fy_seam
        else:
            lx, ly, ly_seam = fx, fy, fy_seam

        # Per-lane partial sums over this tile's rows (sublane reductions).
        px = jnp.sum(lx, axis=0, keepdims=True)                     # (1, W-1)
        py = jnp.sum(ly, axis=0, keepdims=True) + ly_seam           # (1, W)

        # Accumulate into the resident per-batch output block.
        out_ref[0:1, 0:W - 1] += px   # lane W-1 stays at its zero init
        out_ref[1:2, :] += py

    # Rough per-step VMEM footprint (double-buffered inputs + resident output).
    block_bytes = 4 * ((C + Ci) * (TH + 1) * W + 2 * W)
    vmem_limit = int(min(max(4 * block_bytes + (8 << 20), 32 << 20), 56 << 20))

    partials = pl.pallas_call(
        kernel,
        out_shape=jax.ShapeDtypeStruct((B, 2, W), jnp.float32),
        grid_spec=pltpu.PrefetchScalarGridSpec(
            num_scalar_prefetch=0,
            grid=(B, T),
            in_specs=[
                pl.BlockSpec((pl.Squeezed(), C, TH, W),
                             lambda b, t: (b, 0, t, 0)),
                pl.BlockSpec((pl.Squeezed(), pl.Squeezed(), C, 1, W),
                             lambda b, t: (b, t, 0, 0, 0)),
                pl.BlockSpec((pl.Squeezed(), Ci, TH, W),
                             lambda b, t: (b, 0, t, 0)),
                pl.BlockSpec((pl.Squeezed(), pl.Squeezed(), Ci, 1, W),
                             lambda b, t: (b, t, 0, 0, 0)),
            ],
            out_specs=pl.BlockSpec((pl.Squeezed(), 2, W),
                                   lambda b, t: (b, 0, 0)),
        ),
        compiler_params=pltpu.CompilerParams(
            dimension_semantics=("parallel", "arbitrary"),
            vmem_limit_bytes=vmem_limit,
        ),
    )(flow, flow_halo, image, img_halo)

    # Final reductions + means + /2.0 scalings in plain XLA.
    sum_x = jnp.sum(partials[:, 0, :])
    sum_y = jnp.sum(partials[:, 1, :])
    nx = B * C * H * (W - 1)
    ny = B * C * (H - 1) * W
    # loss_x = w_x * |dx| / 2 ; return loss_x.mean()/2 + loss_y.mean()/2
    return 0.25 * (sum_x / nx + sum_y / ny)


def _reference(flow, image):
    """Pure-JAX port of the PyTorch forward (grad=1 path, for verification)."""
    dx = flow[:, :, :, 1:] - flow[:, :, :, :-1]
    dy = flow[:, :, 1:, :] - flow[:, :, :-1, :]
    fx, fy = jnp.abs(dx), jnp.abs(dy)
    if BOUNDARY_AWARENESS:
        img_dx = image[:, :, :, 1:] - image[:, :, :, :-1]
        img_dy = image[:, :, 1:, :] - image[:, :, :-1, :]
        wx = jnp.exp(-jnp.mean(jnp.abs(img_dx), axis=1, keepdims=True) * BOUNDARY_ALPHA)
        wy = jnp.exp(-jnp.mean(jnp.abs(img_dy), axis=1, keepdims=True) * BOUNDARY_ALPHA)
        lx = wx * fx / 2.0
        ly = wy * fy / 2.0
    else:
        lx = fx / 2.0
        ly = fy / 2.0
    return lx.mean() / 2.0 + ly.mean() / 2.0


if __name__ == "__main__":
    key = jax.random.PRNGKey(0)
    k_flow, k_img = jax.random.split(key)

    B, C, H, W = 2, 4, 16, 16   # flow: optical-flow-like tensor
    CI = 3                      # image channels

    flow = jax.random.normal(k_flow, (B, C, H, W), dtype=jnp.float32)
    image = jax.random.uniform(k_img, (B, CI, H, W), dtype=jnp.float32)

    fwd = jax.jit(spatial_smooth_forward)
    out = fwd(flow, image)
    out = jax.block_until_ready(out)

    ref = _reference(flow, image)
    np.testing.assert_allclose(np.asarray(out), np.asarray(ref),
                               rtol=1e-5, atol=1e-6)
    print("KERNEL_OK")
</pallas_src>

<mosaic_0001>
module attributes {stable_mosaic.version = 11 : i64} {
  func.func @kernel(%arg0: i32, %arg1: i32, %arg2: memref<1x4x16x16xf32, #tpu.memory_space<vmem>>, %arg3: memref<1x1x4x1x16xf32, #tpu.memory_space<vmem>>, %arg4: memref<1x3x16x16xf32, #tpu.memory_space<vmem>>, %arg5: memref<1x1x3x1x16xf32, #tpu.memory_space<vmem>>, %arg6: memref<1x2x16xf32, #tpu.memory_space<vmem>>) attributes {dimension_semantics = [#tpu.dimension_semantics<parallel>, #tpu.dimension_semantics<arbitrary>], iteration_bounds = array<i64: 2, 1>, scalar_prefetch = 0 : i64, scratch_operands = 0 : i64, tpu.core_type = #tpu.core_type<tc>, window_params = [{transform_indices = @transform_0, window_bounds = array<i64: 1, 4, 16, 16>}, {transform_indices = @transform_1, window_bounds = array<i64: 1, 1, 4, 1, 16>}, {transform_indices = @transform_2, window_bounds = array<i64: 1, 3, 16, 16>}, {transform_indices = @transform_3, window_bounds = array<i64: 1, 1, 3, 1, 16>}, {transform_indices = @transform_4, window_bounds = array<i64: 1, 2, 16>}]} {
    %c0_i32 = arith.constant 0 : i32
    %0 = arith.cmpi eq, %arg1, %c0_i32 : i32
    %1 = arith.extui %0 : i1 to i32
    %c0_i32_0 = arith.constant 0 : i32
    %2 = arith.cmpi ne, %1, %c0_i32_0 : i32
    scf.if %2 {
      %cst_42 = arith.constant 0.000000e+00 : f32
      %74 = vector.broadcast %cst_42 : f32 to vector<2x16xf32>
      %c0_43 = arith.constant 0 : index
      %c0_44 = arith.constant 0 : index
      %c0_45 = arith.constant 0 : index
      %75 = vector.load %arg6[%c0_43, %c0_44, %c0_45] : memref<1x2x16xf32, #tpu.memory_space<vmem>>, vector<1x2x16xf32>
      %76 = vector.shape_cast %75 : vector<1x2x16xf32> to vector<2x16xf32>
      %77 = vector.shape_cast %74 : vector<2x16xf32> to vector<1x2x16xf32>
      tpu.vector_store %arg6[%c0_43, %c0_44, %c0_45], %77 {strides = array<i32>} : memref<1x2x16xf32, #tpu.memory_space<vmem>>, vector<1x2x16xf32>,
    } else {
    }
    %c0 = arith.constant 0 : index
    %c0_1 = arith.constant 0 : index
    %c0_2 = arith.constant 0 : index
    %c0_3 = arith.constant 0 : index
    %3 = vector.load %arg2[%c0, %c0_1, %c0_2, %c0_3] : memref<1x4x16x16xf32, #tpu.memory_space<vmem>>, vector<1x4x16x16xf32>
    %4 = vector.shape_cast %3 : vector<1x4x16x16xf32> to vector<4x16x16xf32>
    %c0_4 = arith.constant 0 : index
    %c0_5 = arith.constant 0 : index
    %c0_6 = arith.constant 0 : index
    %c0_7 = arith.constant 0 : index
    %c0_8 = arith.constant 0 : index
    %5 = vector.load %arg3[%c0_4, %c0_5, %c0_6, %c0_7, %c0_8] : memref<1x1x4x1x16xf32, #tpu.memory_space<vmem>>, vector<1x1x4x1x16xf32>
    %6 = vector.shape_cast %5 : vector<1x1x4x1x16xf32> to vector<4x1x16xf32>
    %7 = vector.extract_strided_slice %4 {offsets = [0, 0, 1], sizes = [4, 16, 15], strides = [1, 1, 1]} : vector<4x16x16xf32> to vector<4x16x15xf32>
    %8 = vector.extract_strided_slice %4 {offsets = [0, 0, 0], sizes = [4, 16, 15], strides = [1, 1, 1]} : vector<4x16x16xf32> to vector<4x16x15xf32>
    %9 = arith.subf %7, %8 : vector<4x16x15xf32>
    %10 = math.absf %9 : vector<4x16x15xf32>
    %cst = arith.constant dense<0.000000e+00> : vector<16x15xf32>
    %11 = vector.multi_reduction <add>, %10, %cst [0] : vector<4x16x15xf32> to vector<16x15xf32>
    %12 = vector.extract_strided_slice %4 {offsets = [0, 1, 0], sizes = [4, 15, 16], strides = [1, 1, 1]} : vector<4x16x16xf32> to vector<4x15x16xf32>
    %13 = vector.extract_strided_slice %4 {offsets = [0, 0, 0], sizes = [4, 15, 16], strides = [1, 1, 1]} : vector<4x16x16xf32> to vector<4x15x16xf32>
    %14 = arith.subf %12, %13 : vector<4x15x16xf32>
    %15 = vector.extract_strided_slice %4 {offsets = [0, 15, 0], sizes = [4, 1, 16], strides = [1, 1, 1]} : vector<4x16x16xf32> to vector<4x1x16xf32>
    %16 = arith.subf %6, %15 : vector<4x1x16xf32>
    %17 = math.absf %14 : vector<4x15x16xf32>
    %cst_9 = arith.constant dense<0.000000e+00> : vector<15x16xf32>
    %18 = vector.multi_reduction <add>, %17, %cst_9 [0] : vector<4x15x16xf32> to vector<15x16xf32>
    %19 = math.absf %16 : vector<4x1x16xf32>
    %cst_10 = arith.constant dense<0.000000e+00> : vector<1x16xf32>
    %20 = vector.multi_reduction <add>, %19, %cst_10 [0] : vector<4x1x16xf32> to vector<1x16xf32>
    %c0_11 = arith.constant 0 : index
    %c0_12 = arith.constant 0 : index
    %c0_13 = arith.constant 0 : index
    %c0_14 = arith.constant 0 : index
    %21 = vector.load %arg4[%c0_11, %c0_12, %c0_13, %c0_14] : memref<1x3x16x16xf32, #tpu.memory_space<vmem>>, vector<1x3x16x16xf32>
    %22 = vector.shape_cast %21 : vector<1x3x16x16xf32> to vector<3x16x16xf32>
    %c0_15 = arith.constant 0 : index
    %c0_16 = arith.constant 0 : index
    %c0_17 = arith.constant 0 : index
    %c0_18 = arith.constant 0 : index
    %c0_19 = arith.constant 0 : index
    %23 = vector.load %arg5[%c0_15, %c0_16, %c0_17, %c0_18, %c0_19] : memref<1x1x3x1x16xf32, #tpu.memory_space<vmem>>, vector<1x1x3x1x16xf32>
    %24 = vector.shape_cast %23 : vector<1x1x3x1x16xf32> to vector<3x1x16xf32>
    %25 = vector.extract_strided_slice %22 {offsets = [0, 0, 1], sizes = [3, 16, 15], strides = [1, 1, 1]} : vector<3x16x16xf32> to vector<3x16x15xf32>
    %26 = vector.extract_strided_slice %22 {offsets = [0, 0, 0], sizes = [3, 16, 15], strides = [1, 1, 1]} : vector<3x16x16xf32> to vector<3x16x15xf32>
    %27 = arith.subf %25, %26 : vector<3x16x15xf32>
    %28 = math.absf %27 : vector<3x16x15xf32>
    %cst_20 = arith.constant dense<0.000000e+00> : vector<16x15xf32>
    %29 = vector.multi_reduction <add>, %28, %cst_20 [0] : vector<3x16x15xf32> to vector<16x15xf32>
    %cst_21 = arith.constant 3.000000e+00 : f32
    %30 = vector.broadcast %cst_21 : f32 to vector<16x15xf32>
    %31 = arith.divf %29, %30 : vector<16x15xf32>
    %cst_22 = arith.constant -1.000000e+01 : f32
    %32 = vector.broadcast %cst_22 : f32 to vector<16x15xf32>
    %33 = arith.mulf %32, %31 : vector<16x15xf32>
    %34 = math.exp %33 : vector<16x15xf32>
    %35 = vector.extract_strided_slice %22 {offsets = [0, 1, 0], sizes = [3, 15, 16], strides = [1, 1, 1]} : vector<3x16x16xf32> to vector<3x15x16xf32>
    %36 = vector.extract_strided_slice %22 {offsets = [0, 0, 0], sizes = [3, 15, 16], strides = [1, 1, 1]} : vector<3x16x16xf32> to vector<3x15x16xf32>
    %37 = arith.subf %35, %36 : vector<3x15x16xf32>
    %38 = vector.extract_strided_slice %22 {offsets = [0, 15, 0], sizes = [3, 1, 16], strides = [1, 1, 1]} : vector<3x16x16xf32> to vector<3x1x16xf32>
    %39 = arith.subf %24, %38 : vector<3x1x16xf32>
    %40 = math.absf %37 : vector<3x15x16xf32>
    %cst_23 = arith.constant dense<0.000000e+00> : vector<15x16xf32>
    %41 = vector.multi_reduction <add>, %40, %cst_23 [0] : vector<3x15x16xf32> to vector<15x16xf32>
    %cst_24 = arith.constant 3.000000e+00 : f32
    %42 = vector.broadcast %cst_24 : f32 to vector<15x16xf32>
    %43 = arith.divf %41, %42 : vector<15x16xf32>
    %cst_25 = arith.constant -1.000000e+01 : f32
    %44 = vector.broadcast %cst_25 : f32 to vector<15x16xf32>
    %45 = arith.mulf %44, %43 : vector<15x16xf32>
    %46 = math.exp %45 : vector<15x16xf32>
    %47 = math.absf %39 : vector<3x1x16xf32>
    %cst_26 = arith.constant dense<0.000000e+00> : vector<1x16xf32>
    %48 = vector.multi_reduction <add>, %47, %cst_26 [0] : vector<3x1x16xf32> to vector<1x16xf32>
    %cst_27 = arith.constant 3.000000e+00 : f32
    %49 = vector.broadcast %cst_27 : f32 to vector<1x16xf32>
    %50 = arith.divf %48, %49 : vector<1x16xf32>
    %cst_28 = arith.constant -1.000000e+01 : f32
    %51 = vector.broadcast %cst_28 : f32 to vector<1x16xf32>
    %52 = arith.mulf %51, %50 : vector<1x16xf32>
    %53 = math.exp %52 : vector<1x16xf32>
    %54 = arith.mulf %34, %11 : vector<16x15xf32>
    %55 = arith.mulf %46, %18 : vector<15x16xf32>
    %56 = arith.mulf %53, %20 : vector<1x16xf32>
    %cst_29 = arith.constant dense<0.000000e+00> : vector<15xf32>
    %57 = vector.multi_reduction <add>, %54, %cst_29 [0] : vector<16x15xf32> to vector<15xf32>
    %58 = vector.shape_cast %57 : vector<15xf32> to vector<1x15xf32>
    %cst_30 = arith.constant dense<0.000000e+00> : vector<16xf32>
    %59 = vector.multi_reduction <add>, %55, %cst_30 [0] : vector<15x16xf32> to vector<16xf32>
    %60 = vector.shape_cast %59 : vector<16xf32> to vector<1x16xf32>
    %61 = arith.addf %60, %56 : vector<1x16xf32>
    %c0_31 = arith.constant 0 : index
    %c0_32 = arith.constant 0 : index
    %c0_33 = arith.constant 0 : index
    %62 = vector.load %arg6[%c0_31, %c0_32, %c0_33] : memref<1x2x16xf32, #tpu.memory_space<vmem>>, vector<1x1x15xf32>
    %63 = vector.shape_cast %62 : vector<1x1x15xf32> to vector<1x15xf32>
    %64 = arith.addf %63, %58 : vector<1x15xf32>
    %c0_34 = arith.constant 0 : index
    %c0_35 = arith.constant 0 : index
    %c0_36 = arith.constant 0 : index
    %65 = vector.load %arg6[%c0_34, %c0_35, %c0_36] : memref<1x2x16xf32, #tpu.memory_space<vmem>>, vector<1x1x15xf32>
    %66 = vector.shape_cast %65 : vector<1x1x15xf32> to vector<1x15xf32>
    %67 = vector.shape_cast %64 : vector<1x15xf32> to vector<1x1x15xf32>
    tpu.vector_store %arg6[%c0_34, %c0_35, %c0_36], %67 {strides = array<i32>} : memref<1x2x16xf32, #tpu.memory_space<vmem>>, vector<1x1x15xf32>,
    %c0_37 = arith.constant 0 : index
    %c1 = arith.constant 1 : index
    %c0_38 = arith.constant 0 : index
    %68 = vector.load %arg6[%c0_37, %c1, %c0_38] : memref<1x2x16xf32, #tpu.memory_space<vmem>>, vector<1x1x16xf32>
    %69 = vector.shape_cast %68 : vector<1x1x16xf32> to vector<1x16xf32>
    %70 = arith.addf %69, %61 : vector<1x16xf32>
    %c0_39 = arith.constant 0 : index
    %c1_40 = arith.constant 1 : index
    %c0_41 = arith.constant 0 : index
    %71 = vector.load %arg6[%c0_39, %c1_40, %c0_41] : memref<1x2x16xf32, #tpu.memory_space<vmem>>, vector<1x1x16xf32>
    %72 = vector.shape_cast %71 : vector<1x1x16xf32> to vector<1x16xf32>
    %73 = vector.shape_cast %70 : vector<1x16xf32> to vector<1x1x16xf32>
    tpu.vector_store %arg6[%c0_39, %c1_40, %c0_41], %73 {strides = array<i32>} : memref<1x2x16xf32, #tpu.memory_space<vmem>>, vector<1x1x16xf32>,
    return
  }
  func.func @transform_0(%arg0: i32, %arg1: i32) -> (i32, i32, i32, i32) {
    %c0_i32 = arith.constant 0 : i32
    %c0_i32_0 = arith.constant 0 : i32
    %c0_i32_1 = arith.constant 0 : i32
    return %arg0, %c0_i32, %arg1, %c0_i32_0 : i32, i32, i32, i32
  }
  func.func @transform_1(%arg0: i32, %arg1: i32) -> (i32, i32, i32, i32, i32) {
    %c0_i32 = arith.constant 0 : i32
    %c0_i32_0 = arith.constant 0 : i32
    %c0_i32_1 = arith.constant 0 : i32
    %c0_i32_2 = arith.constant 0 : i32
    return %arg0, %arg1, %c0_i32, %c0_i32_0, %c0_i32_1 : i32, i32, i32, i32, i32
  }
  func.func @transform_2(%arg0: i32, %arg1: i32) -> (i32, i32, i32, i32) {
    %c0_i32 = arith.constant 0 : i32
    %c0_i32_0 = arith.constant 0 : i32
    %c0_i32_1 = arith.constant 0 : i32
    return %arg0, %c0_i32, %arg1, %c0_i32_0 : i32, i32, i32, i32
  }
  func.func @transform_3(%arg0: i32, %arg1: i32) -> (i32, i32, i32, i32, i32) {
    %c0_i32 = arith.constant 0 : i32
    %c0_i32_0 = arith.constant 0 : i32
    %c0_i32_1 = arith.constant 0 : i32
    %c0_i32_2 = arith.constant 0 : i32
    return %arg0, %arg1, %c0_i32, %c0_i32_0, %c0_i32_1 : i32, i32, i32, i32, i32
  }
  func.func @transform_4(%arg0: i32, %arg1: i32) -> (i32, i32, i32) {
    %c0_i32 = arith.constant 0 : i32
    %c0_i32_0 = arith.constant 0 : i32
    %c0_i32_1 = arith.constant 0 : i32
    return %arg0, %c0_i32, %c0_i32_0 : i32, i32, i32
  }
}

</mosaic_0001>

<llo_original>
// kernel: spatial_smooth_forward.1
$region0: #{spatial_smooth_forward.1}
  #allocation0 [shape = 'u32[]', space=smem, size = 0x4, offset = 0x4, fixed_abs, tag = 'smem constant byte address 0x4 - core index']
  #allocation1 [shape = 'u32[144,128]{1,0:T(1,128)}', space=vmem, size = 0x12000, scoped, tag = 'internal scratch']
  %s0 = inlined_call_operand.hbm [shape: f32[2,4,16,16], index: 0, kind: input, shape index: {}]
  %s1 = inlined_call_operand.vmem [shape: f32[2,1,4,1,16], index: 1, kind: input, shape index: {}]
  %s2 = inlined_call_operand.hbm [shape: f32[2,3,16,16], index: 2, kind: input, shape index: {}]
  %s3 = inlined_call_operand.vmem [shape: f32[2,1,3,1,16], index: 3, kind: input, shape index: {}]
  %s4 = inlined_call_operand.vmem [shape: f32[2,2,16], index: 4, kind: output, shape index: {}]
  %s5 = sld [smem:[#allocation0]]
  $region61: #{spatial_smooth_forward.1} parent=0
    _
  %s7 = ssub.s32 1, %s5
  %s8 = scalar_select 0, %s7, %s5
  $region1: #{spatial_smooth_forward.1} parent=0
    #allocation2 [shape = 'u8[65536]{0}', space=vmem, size = 0x10000, scoped, tag = 'input window, operand 0']
    #allocation3 [shape = 's32[2]{0}', space=sflag, size = 0x8, scoped, tag = 'scoped memory for spatial_smooth_forward.1']
    #allocation4 [shape = 'u8[49152]{0}', space=vmem, size = 0xc000, scoped, tag = 'input window, operand 2']
    #allocation5 [shape = 's32[2]{0}', space=sflag, size = 0x8, scoped, tag = 'scoped memory for spatial_smooth_forward.1']
    %9 = vsyncpa [#allocation3], 0
    %s10 = scalar_lea.sflag [#allocation3], 1
    %11 = vsyncpa %s10, 0
    %12 = vsyncpa [#allocation5], 0
    %s13 = scalar_lea.sflag [#allocation5], 1
    %14 = vsyncpa %s13, 0
    loop: start=0, step=1, limit=4
    $region2: #{spatial_smooth_forward.1} parent=1 // loop_pre_header
      _
    $region3: #{spatial_smooth_forward.1} parent=1 // loop_header
      %s16 = sphi 0, %s20
      %p17 = scmp.ge.s32.totalorder %s16, 4
      %s23 = sphi 0, %s35
      %s24 = sphi 0, %s31
      %s25 = sphi 0, %s23
      %s26 = sphi 0, %s24
      %s27 = sphi 0, %s25
      %s28 = sphi 0, %s26
      %s40 = sphi 0, %s42
      %s43 = sphi 0, %s40
      %s44 = sphi 0, %s43
      %s60 = sphi 0, %s44
      %s68 = sphi 0, %s70
      %s71 = sphi 0, %s68
      %s72 = sphi 0, %s71
      %s88 = sphi 0, %s72
      %s96 = sphi 0, %s98
      %s99 = sphi 0, %s96
      %s100 = sphi 0, %s99
      %s116 = sphi 0, %s100
      %s124 = sphi 0, %s126
      %s127 = sphi 0, %s124
      %s128 = sphi 0, %s127
      %s144 = sphi 0, %s128
      %s150 = sphi 0, %s152
      %s153 = sphi 0, %s150
      %s154 = sphi 0, %s153
      %s170 = sphi 0, %s154
    $region4: #{spatial_smooth_forward.1} parent=1 // loop_header_branch
      %19 = sbr.rel (%p17) target = $region8
    $region5: #{spatial_smooth_forward.1} parent=1 // loop_body
      %s21 = ssub.s32 %s16, 1
      %s22 = ssub.s32 %s16, 2
      %s29 = sadd.s32 1, %s24
      %p30 = scmp.ge.s32.totalorder %s29, 1
      %s31 = scalar_select %p30, 0, %s29
      %s32 = sadd.s32 1, %s23
      %s33 = scalar_select %p30, %s32, %s23
      %p34 = scmp.ge.s32.totalorder %s33, 2
      %s35 = scalar_select %p34, 0, %s33
      %s36 = ssub.s32 %s23, %s35
      %s37 = ssub.s32 %s24, %s31
      %s38 = sor.u32 %s36, %s37
      %p39 = scmp.eq.s32.totalorder %s38, 0
      %s41 = sadd.s32 %s40, 1
      %s42 = scalar_select %p39, %s40, %s41
      %p45 = pneg %p39
      %p46 = scmp.eq.s32.totalorder %s16, 1
      %p47 = por %p45, %p46
      %p48 = scmp.ne.s32.totalorder %s40, %s43
      %p49 = scmp.eq.s32.totalorder %s16, 0
      %p50 = por %p48, %p49
      %p51 = scmp.ne.s32.totalorder %s40, %s43
      %p52 = scmp.eq.s32.totalorder %s21, 1
      %p53 = por %p51, %p52
      %p54 = scmp.ne.s32.totalorder %s43, %s44
      %p55 = scmp.eq.s32.totalorder %s21, 0
      %p56 = por %p54, %p55
      %p57 = scmp.ne.s32.totalorder %s43, %s44
      %p58 = scmp.eq.s32.totalorder %s22, 1
      %p59 = por %p57, %p58
      %p61 = scmp.ne.s32.totalorder %s44, %s60
      %p62 = scmp.eq.s32.totalorder %s22, 0
      %p63 = por %p61, %p62
      %s64 = ssub.s32 %s23, %s35
      %s65 = ssub.s32 %s24, %s31
      %s66 = sor.u32 %s64, %s65
      %p67 = scmp.eq.s32.totalorder %s66, 0
      %s69 = sadd.s32 %s68, 1
      %s70 = scalar_select %p67, %s68, %s69
      %p73 = pneg %p67
      %p74 = scmp.eq.s32.totalorder %s16, 1
      %p75 = por %p73, %p74
      %p76 = scmp.ne.s32.totalorder %s68, %s71
      %p77 = scmp.eq.s32.totalorder %s16, 0
      %p78 = por %p76, %p77
      %p79 = scmp.ne.s32.totalorder %s68, %s71
      %p80 = scmp.eq.s32.totalorder %s21, 1
      %p81 = por %p79, %p80
      %p82 = scmp.ne.s32.totalorder %s71, %s72
      %p83 = scmp.eq.s32.totalorder %s21, 0
      %p84 = por %p82, %p83
      %p85 = scmp.ne.s32.totalorder %s71, %s72
      %p86 = scmp.eq.s32.totalorder %s22, 1
      %p87 = por %p85, %p86
      %p89 = scmp.ne.s32.totalorder %s72, %s88
      %p90 = scmp.eq.s32.totalorder %s22, 0
      %p91 = por %p89, %p90
      %s92 = ssub.s32 %s23, %s35
      %s93 = ssub.s32 %s24, %s31
      %s94 = sor.u32 %s92, %s93
      %p95 = scmp.eq.s32.totalorder %s94, 0
      %s97 = sadd.s32 %s96, 1
      %s98 = scalar_select %p95, %s96, %s97
      %p101 = pneg %p95
      %p102 = scmp.eq.s32.totalorder %s16, 1
      %p103 = por %p101, %p102
      %p104 = scmp.ne.s32.totalorder %s96, %s99
      %p105 = scmp.eq.s32.totalorder %s16, 0
      %p106 = por %p104, %p105
      %p107 = scmp.ne.s32.totalorder %s96, %s99
      %p108 = scmp.eq.s32.totalorder %s21, 1
      %p109 = por %p107, %p108
      %p110 = scmp.ne.s32.totalorder %s99, %s100
      %p111 = scmp.eq.s32.totalorder %s21, 0
      %p112 = por %p110, %p111
      %p113 = scmp.ne.s32.totalorder %s99, %s100
      %p114 = scmp.eq.s32.totalorder %s22, 1
      %p115 = por %p113, %p114
      %p117 = scmp.ne.s32.totalorder %s100, %s116
      %p118 = scmp.eq.s32.totalorder %s22, 0
      %p119 = por %p117, %p118
      %s120 = ssub.s32 %s23, %s35
      %s121 = ssub.s32 %s24, %s31
      %s122 = sor.u32 %s120, %s121
      %p123 = scmp.eq.s32.totalorder %s122, 0
      %s125 = sadd.s32 %s124, 1
      %s126 = scalar_select %p123, %s124, %s125
      %p129 = pneg %p123
      %p130 = scmp.eq.s32.totalorder %s16, 1
      %p131 = por %p129, %p130
      %p132 = scmp.ne.s32.totalorder %s124, %s127
      %p133 = scmp.eq.s32.totalorder %s16, 0
      %p134 = por %p132, %p133
      %p135 = scmp.ne.s32.totalorder %s124, %s127
      %p136 = scmp.eq.s32.totalorder %s21, 1
      %p137 = por %p135, %p136
      %p138 = scmp.ne.s32.totalorder %s127, %s128
      %p139 = scmp.eq.s32.totalorder %s21, 0
      %p140 = por %p138, %p139
      %p141 = scmp.ne.s32.totalorder %s127, %s128
      %p142 = scmp.eq.s32.totalorder %s22, 1
      %p143 = por %p141, %p142
      %p145 = scmp.ne.s32.totalorder %s128, %s144
      %p146 = scmp.eq.s32.totalorder %s22, 0
      %p147 = por %p145, %p146
      %s148 = ssub.s32 %s23, %s35
      %p149 = scmp.eq.s32.totalorder %s148, 0
      %s151 = sadd.s32 %s150, 1
      %s152 = scalar_select %p149, %s150, %s151
      %p155 = pneg %p149
      %p156 = scmp.eq.s32.totalorder %s16, 1
      %p157 = por %p155, %p156
      %p158 = scmp.ne.s32.totalorder %s150, %s153
      %p159 = scmp.eq.s32.totalorder %s16, 0
      %p160 = por %p158, %p159
      %p161 = scmp.ne.s32.totalorder %s150, %s153
      %p162 = scmp.eq.s32.totalorder %s21, 1
      %p163 = por %p161, %p162
      %p164 = scmp.ne.s32.totalorder %s153, %s154
      %p165 = scmp.eq.s32.totalorder %s21, 0
      %p166 = por %p164, %p165
      %p167 = scmp.ne.s32.totalorder %s153, %s154
      %p168 = scmp.eq.s32.totalorder %s22, 1
      %p169 = por %p167, %p168
      %p171 = scmp.ne.s32.totalorder %s154, %s170
      %p172 = scmp.eq.s32.totalorder %s22, 0
      %p173 = por %p171, %p172
      %p174 = scmp.le.s32.totalorder 1, %s16
      %p175 = scmp.lt.s32.totalorder %s16, 3
      %p176 = pnand %p174, %p175
      %p177 = pneg %p176
      // Predicated region
      $region9: #{spatial_smooth_forward.1} parent=5 // pred_check
        _
      $region10: #{spatial_smooth_forward.1} parent=5 // pred_check_branch
        %179 = sbr.rel (%p176) target = $region12
      $region11: #{spatial_smooth_forward.1} parent=5 // pred_region
        %s180 = ssub.s32 %s16, 1
      $region12: #{spatial_smooth_forward.1} parent=5 // pred_fallthru
        _
      %p181 = scmp.lt.s32.totalorder %s16, 2
      // Predicated region
      $region13: #{spatial_smooth_forward.1} parent=5 // pred_check
        %p182 = pneg %p181
      $region14: #{spatial_smooth_forward.1} parent=5 // pred_check_branch
        %184 = sbr.rel (%p182) target = $region16
      $region15: #{spatial_smooth_forward.1} parent=5 // pred_region
        // Predicated region
        $region17: #{spatial_smooth_forward.1} parent=15 // pred_check
          %p185 = pneg %p50
        $region18: #{spatial_smooth_forward.1} parent=15 // pred_check_branch
          %187 = sbr.rel (%p185) target = $region20
        $region19: #{spatial_smooth_forward.1} parent=15 // pred_region
          %s188 = sand.u32 %s40, 1
          %s189 = scalar_lea.sflag [#allocation3], %s188
          %s190 = sand.u32 %s40, 1
          %s191 = smul.addr %s190, 64
          %s192 = scalar_lea.vmem [#allocation2], %s191
          %s193 = smul.u32 2, %s24
          %s195 = ssub.s32 1024, 1024
          %196 = vsyncadd %s189, %s195
          %s197 = smul.addr %s23, 8
          %s198 = sadd.s32 %s193, %s197
          %s199 = smul.addr %s198, 128
          %s200 = scalar_lea.hbm %s0, %s199
          %s201 = sshll.u32 %s192, 4
          %s202 = int_to_ptr.vmem [resolvable:$true] %s201
          %207 = dma.hbm_to_vmem [thread:$0]  %s200, 1024, %s202, %s189, 128, 128, 8
        $region20: #{spatial_smooth_forward.1} parent=15 // pred_fallthru
          _
        // Predicated region
        $region21: #{spatial_smooth_forward.1} parent=15 // pred_check
          %p208 = pneg %p78
        $region22: #{spatial_smooth_forward.1} parent=15 // pred_check_branch
          %210 = sbr.rel (%p208) target = $region24
        $region23: #{spatial_smooth_forward.1} parent=15 // pred_region
          %p211 = scmp.lt.s32.totalorder %s23, 1
          %s212 = scalar_select %p211, %s23, 1
          %p213 = scmp.lt.s32.totalorder %s24, 0
          %s214 = scalar_select %p213, %s24, 0
          %s215 = smul.addr %s214, 4
          %s216 = smul.addr %s212, 4
          %s217 = sadd.s32 %s215, %s216
          %s218 = scalar_lea.vmem %s1, %s217
        $region24: #{spatial_smooth_forward.1} parent=15 // pred_fallthru
          _
        // Predicated region
        $region25: #{spatial_smooth_forward.1} parent=15 // pred_check
          %p219 = pneg %p106
        $region26: #{spatial_smooth_forward.1} parent=15 // pred_check_branch
          %221 = sbr.rel (%p219) target = $region28
        $region27: #{spatial_smooth_forward.1} parent=15 // pred_region
          %s222 = sand.u32 %s96, 1
          %s223 = scalar_lea.sflag [#allocation5], %s222
          %s224 = sand.u32 %s96, 1
          %s225 = smul.addr %s224, 48
          %s226 = scalar_lea.vmem [#allocation4], %s225
          %s227 = smul.u32 2, %s24
          %s229 = ssub.s32 768, 768
          %230 = vsyncadd %s223, %s229
          %s231 = smul.addr %s23, 6
          %s232 = sadd.s32 %s227, %s231
          %s233 = smul.addr %s232, 128
          %s234 = scalar_lea.hbm %s2, %s233
          %s235 = sshll.u32 %s226, 4
          %s236 = int_to_ptr.vmem [resolvable:$true] %s235
          %241 = dma.hbm_to_vmem [thread:$0]  %s234, 768, %s236, %s223, 128, 128, 8
        $region28: #{spatial_smooth_forward.1} parent=15 // pred_fallthru
          _
        // Predicated region
        $region29: #{spatial_smooth_forward.1} parent=15 // pred_check
          %p242 = pneg %p134
        $region30: #{spatial_smooth_forward.1} parent=15 // pred_check_branch
          %244 = sbr.rel (%p242) target = $region32
        $region31: #{spatial_smooth_forward.1} parent=15 // pred_region
          %p245 = scmp.lt.s32.totalorder %s23, 1
          %s246 = scalar_select %p245, %s23, 1
          %p247 = scmp.lt.s32.totalorder %s24, 0
          %s248 = scalar_select %p247, %s24, 0
          %s249 = smul.addr %s248, 3
          %s250 = smul.addr %s246, 3
          %s251 = sadd.s32 %s249, %s250
          %s252 = scalar_lea.vmem %s3, %s251
        $region32: #{spatial_smooth_forward.1} parent=15 // pred_fallthru
          _
      $region16: #{spatial_smooth_forward.1} parent=5 // pred_fallthru
        _
      %p253 = scmp.le.s32.totalorder 1, %s16
      %p254 = scmp.lt.s32.totalorder %s16, 3
      %p255 = pnand %p253, %p254
      %p256 = pneg %p255
      // Predicated region
      $region33: #{spatial_smooth_forward.1} parent=5 // pred_check
        _
      $region34: #{spatial_smooth_forward.1} parent=5 // pred_check_branch
        %258 = sbr.rel (%p255) target = $region36
      $region35: #{spatial_smooth_forward.1} parent=5 // pred_region
        %s259 = ssub.s32 %s16, 1
        %s260 = sand.u32 %s43, 1
        %s261 = scalar_lea.sflag [#allocation3], %s260
        %s262 = sand.u32 %s43, 1
        %s263 = smul.addr %s262, 64
        %s264 = scalar_lea.vmem [#allocation2], %s263
        // Predicated region
        $region37: #{spatial_smooth_forward.1} parent=35 // pred_check
          %p265 = pneg %p56
        $region38: #{spatial_smooth_forward.1} parent=35 // pred_check_branch
          %267 = sbr.rel (%p265) target = $region40
        $region39: #{spatial_smooth_forward.1} parent=35 // pred_region
          %268 = dma.done %s261, 1024
        $region40: #{spatial_smooth_forward.1} parent=35 // pred_fallthru
          _
        %s269 = sand.u32 %s99, 1
        %s270 = scalar_lea.sflag [#allocation5], %s269
        %s271 = sand.u32 %s99, 1
        %s272 = smul.addr %s271, 48
        %s273 = scalar_lea.vmem [#allocation4], %s272
        // Predicated region
        $region41: #{spatial_smooth_forward.1} parent=35 // pred_check
          %p274 = pneg %p112
        $region42: #{spatial_smooth_forward.1} parent=35 // pred_check_branch
          %276 = sbr.rel (%p274) target = $region44
        $region43: #{spatial_smooth_forward.1} parent=35 // pred_region
          %277 = dma.done %s270, 768
        $region44: #{spatial_smooth_forward.1} parent=35 // pred_fallthru
          _
        %s278 = sand.u32 %s43, 1
        %s279 = scalar_lea.sflag [#allocation3], %s278
        %s280 = sand.u32 %s43, 1
        %s281 = smul.addr %s280, 64
        %s282 = scalar_lea.vmem [#allocation2], %s281
        %p283 = pneg %p56
        %p284 = pneg %p53
        %p285 = scmp.lt.s32.totalorder %s25, 1
        %s286 = scalar_select %p285, %s25, 1
        %p287 = scmp.lt.s32.totalorder %s26, 0
        %s288 = scalar_select %p287, %s26, 0
        %s289 = smul.addr %s288, 4
        %s290 = smul.addr %s286, 4
        %s291 = sadd.s32 %s289, %s290
        %s292 = scalar_lea.vmem %s1, %s291
        %p293 = pneg %p84
        %p294 = pneg %p81
        %s295 = sand.u32 %s99, 1
        %s296 = scalar_lea.sflag [#allocation5], %s295
        %s297 = sand.u32 %s99, 1
        %s298 = smul.addr %s297, 48
        %s299 = scalar_lea.vmem [#allocation4], %s298
        %p300 = pneg %p112
        %p301 = pneg %p109
        %p302 = scmp.lt.s32.totalorder %s25, 1
        %s303 = scalar_select %p302, %s25, 1
        %p304 = scmp.lt.s32.totalorder %s26, 0
        %s305 = scalar_select %p304, %s26, 0
        %s306 = smul.addr %s305, 3
        %s307 = smul.addr %s303, 3
        %s308 = sadd.s32 %s306, %s307
        %s309 = scalar_lea.vmem %s3, %s308
        %p310 = pneg %p140
        %p311 = pneg %p137
        %p312 = pneg %p166
        %p313 = pneg %p163
        %p314 = scmp.lt.s32.totalorder %s25, 1
        %s315 = scalar_select %p314, %s25, 1
        %s316 = smul.addr %s315, 2
        %s317 = scalar_lea.vmem %s4, %s316
        %s318 = smul.u32 2, %s26
        %p319 = scmp.lt.s32.totalorder %s25, 1
        %s320 = scalar_select %p319, %s25, 1
        %p321 = scmp.lt.s32.totalorder %s26, 0
        %s322 = scalar_select %p321, %s26, 0
        %s323 = smul.addr %s322, 4
        %s324 = smul.addr %s320, 4
        %s325 = sadd.s32 %s323, %s324
        %s326 = scalar_lea.vmem %s1, %s325
        %s327 = smul.u32 2, %s26
        %p328 = scmp.lt.s32.totalorder %s25, 1
        %s329 = scalar_select %p328, %s25, 1
        %p330 = scmp.lt.s32.totalorder %s26, 0
        %s331 = scalar_select %p330, %s26, 0
        %s332 = smul.addr %s331, 3
        %s333 = smul.addr %s329, 3
        %s334 = sadd.s32 %s332, %s333
        %s335 = scalar_lea.vmem %s3, %s334
        %p336 = scmp.lt.s32.totalorder %s25, 1
        %s337 = scalar_select %p336, %s25, 1
        %s338 = smul.addr %s337, 2
        %s339 = scalar_lea.vmem %s4, %s338
        %p340 = scmp.eq.s32.totalorder %s26, 0
        // Predicated region
        $region45: #{spatial_smooth_forward.1} parent=35 // pred_check
          %p341 = pneg %p340
        $region46: #{spatial_smooth_forward.1} parent=35 // pred_check_branch
          %343 = sbr.rel (%p341) target = $region48
        $region47: #{spatial_smooth_forward.1} parent=35 // pred_region
          %vm344 = vcmask 123904
          %345 = vst.msk [vmem:[%s339] sm:$0x3] %vm344, 0.0
        $region48: #{spatial_smooth_forward.1} parent=35 // pred_fallthru
          _
        %v346 = vld [vmem:[%s264] sm:$0xff]
        %v347 = vld [vmem:[%s264 + $0x8] sm:$0xff]
        %v348 = vld [vmem:[%s264 + $0x10] sm:$0xff]
        %v349 = vld [vmem:[%s264 + $0x18] sm:$0xff]
        %v350 = vld [vmem:[%s264 + $0x20] sm:$0xff]
        %v351 = vld [vmem:[%s264 + $0x28] sm:$0xff]
        %v352 = vld [vmem:[%s264 + $0x30] sm:$0xff]
        %v353 = vld [vmem:[%s264 + $0x38] sm:$0xff]
        %v354 = vld [vmem:[%s326] sm:$0x1]
        %v355 = vld [vmem:[%s326 + $0x1] sm:$0x1]
        %v356 = vld [vmem:[%s326 + $0x2] sm:$0x1]
        %v357 = vld [vmem:[%s326 + $0x3] sm:$0x1]
        %366 = vrot.lane.b32.xlu0 %v346, 1
        %v367 = vpop.permute.xlu0 %366
        %368 = vrot.lane.b32.xlu0 %v347, 1
        %v369 = vpop.permute.xlu0 %368
        %370 = vrot.lane.b32.xlu0 %v348, 1
        %v371 = vpop.permute.xlu0 %370
        %372 = vrot.lane.b32.xlu0 %v349, 1
        %v373 = vpop.permute.xlu0 %372
        %374 = vrot.lane.b32.xlu0 %v350, 1
        %v375 = vpop.permute.xlu0 %374
        %376 = vrot.lane.b32.xlu0 %v351, 1
        %v377 = vpop.permute.xlu0 %376
        %378 = vrot.lane.b32.xlu0 %v352, 1
        %v379 = vpop.permute.xlu0 %378
        %380 = vrot.lane.b32.xlu0 %v353, 1
        %v381 = vpop.permute.xlu0 %380
        %v390 = vsub.f32 %v346, %v367
        %v391 = vsub.f32 %v347, %v369
        %v392 = vsub.f32 %v348, %v371
        %v393 = vsub.f32 %v349, %v373
        %v394 = vsub.f32 %v350, %v375
        %v395 = vsub.f32 %v351, %v377
        %v396 = vsub.f32 %v352, %v379
        %v397 = vsub.f32 %v353, %v381
        %v398 = vand.u32 2147483647, %v390
        %v399 = vand.u32 2147483647, %v391
        %v400 = vand.u32 2147483647, %v392
        %v401 = vand.u32 2147483647, %v393
        %v402 = vand.u32 2147483647, %v394
        %v403 = vand.u32 2147483647, %v395
        %v404 = vand.u32 2147483647, %v396
        %v405 = vand.u32 2147483647, %v397
        %vm406 = vcmask 130056
        %v407 = vsel %vm406, %v398, 0.0
        %v408 = vsel %vm406, %v400, 0.0
        %v409 = vadd.f32 %v407, %v408
        %v410 = vsel %vm406, %v402, 0.0
        %v411 = vadd.f32 %v409, %v410
        %v412 = vsel %vm406, %v404, 0.0
        %v413 = vadd.f32 %v411, %v412
        %v414 = vsel %vm406, %v399, 0.0
        %v415 = vsel %vm406, %v401, 0.0
        %v416 = vadd.f32 %v414, %v415
        %v417 = vsel %vm406, %v403, 0.0
        %v418 = vadd.f32 %v416, %v417
        %v419 = vsel %vm406, %v405, 0.0
        %v420 = vadd.f32 %v418, %v419
        %vm421 = vcmask 1040384
        %v422 = vrot.slane %v346, 7
        %v423 = vrot.slane %v347, 7
        %v424 = vsel %vm421, %v422, %v423
        %v425 = vrot.slane %v348, 7
        %v426 = vrot.slane %v349, 7
        %v427 = vsel %vm421, %v425, %v426
        %v428 = vrot.slane %v350, 7
        %v429 = vrot.slane %v351, 7
        %v430 = vsel %vm421, %v428, %v429
        %v431 = vrot.slane %v352, 7
        %v432 = vrot.slane %v353, 7
        %v433 = vsel %vm421, %v431, %v432
        %v442 = vsub.f32 %v346, %v422
        %v443 = vsub.f32 %v347, %v424
        %v444 = vsub.f32 %v348, %v425
        %v445 = vsub.f32 %v349, %v427
        %v446 = vsub.f32 %v350, %v428
        %v447 = vsub.f32 %v351, %v430
        %v448 = vsub.f32 %v352, %v431
        %v449 = vsub.f32 %v353, %v433
        %v450 = vcombine.high %v347, %v347
        %v452 = vunpack.c.l.s4 1966171168
        %v453 = vunpack.c.0.s8 %v452
        %v454 = vlaneseq
        %v455 = vshrl.u32 %v454, 7
        %v456 = vsub.s32 %v453, %v455
        %v457 = vrot.slane %v450, %v456
        %v458 = vcombine.high %v457, %v457
        %v460 = vunpack.c.l.s4 1966171168
        %v461 = vunpack.c.0.s8 %v460
        %v462 = vlaneseq
        %v463 = vshrl.u32 %v462, 7
        %v464 = vsub.s32 %v461, %v463
        %v465 = vrot.slane %v458, %v464
        %v466 = vcombine.high %v465, %v465
        %v467 = vcombine.high %v349, %v349
        %v469 = vunpack.c.l.s4 1966171168
        %v470 = vunpack.c.0.s8 %v469
        %v471 = vlaneseq
        %v472 = vshrl.u32 %v471, 7
        %v473 = vsub.s32 %v470, %v472
        %v474 = vrot.slane %v467, %v473
        %v475 = vcombine.high %v474, %v474
        %v477 = vunpack.c.l.s4 1966171168
        %v478 = vunpack.c.0.s8 %v477
        %v479 = vlaneseq
        %v480 = vshrl.u32 %v479, 7
        %v481 = vsub.s32 %v478, %v480
        %v482 = vrot.slane %v475, %v481
        %v483 = vcombine.high %v482, %v482
        %v484 = vcombine.high %v351, %v351
        %v486 = vunpack.c.l.s4 1966171168
        %v487 = vunpack.c.0.s8 %v486
        %v488 = vlaneseq
        %v489 = vshrl.u32 %v488, 7
        %v490 = vsub.s32 %v487, %v489
        %v491 = vrot.slane %v484, %v490
        %v492 = vcombine.high %v491, %v491
        %v494 = vunpack.c.l.s4 1966171168
        %v495 = vunpack.c.0.s8 %v494
        %v496 = vlaneseq
        %v497 = vshrl.u32 %v496, 7
        %v498 = vsub.s32 %v495, %v497
        %v499 = vrot.slane %v492, %v498
        %v500 = vcombine.high %v499, %v499
        %v501 = vcombine.high %v353, %v353
        %v503 = vunpack.c.l.s4 1966171168
        %v504 = vunpack.c.0.s8 %v503
        %v505 = vlaneseq
        %v506 = vshrl.u32 %v505, 7
        %v507 = vsub.s32 %v504, %v506
        %v508 = vrot.slane %v501, %v507
        %v509 = vcombine.high %v508, %v508
        %v511 = vunpack.c.l.s4 1966171168
        %v512 = vunpack.c.0.s8 %v511
        %v513 = vlaneseq
        %v514 = vshrl.u32 %v513, 7
        %v515 = vsub.s32 %v512, %v514
        %v516 = vrot.slane %v509, %v515
        %v517 = vcombine.high %v516, %v516
        %v522 = vsub.f32 %v354, %v466
        %v523 = vsub.f32 %v355, %v483
        %v524 = vsub.f32 %v356, %v500
        %v525 = vsub.f32 %v357, %v517
        %v526 = vand.u32 2147483647, %v442
        %v527 = vand.u32 2147483647, %v443
        %v528 = vand.u32 2147483647, %v444
        %v529 = vand.u32 2147483647, %v445
        %v530 = vand.u32 2147483647, %v446
        %v531 = vand.u32 2147483647, %v447
        %v532 = vand.u32 2147483647, %v448
        %v533 = vand.u32 2147483647, %v449
        %vm534 = vcmask 130049
        %v535 = vsel %vm534, %v526, 0.0
        %v536 = vsel %vm534, %v528, 0.0
        %v537 = vadd.f32 %v535, %v536
        %v538 = vsel %vm534, %v530, 0.0
        %v539 = vadd.f32 %v537, %v538
        %v540 = vsel %vm534, %v532, 0.0
        %v541 = vadd.f32 %v539, %v540
        %vm542 = vcmask 130048
        %v543 = vsel %vm542, %v527, 0.0
        %v544 = vsel %vm542, %v529, 0.0
        %v545 = vadd.f32 %v543, %v544
        %v546 = vsel %vm542, %v531, 0.0
        %v547 = vadd.f32 %v545, %v546
        %v548 = vsel %vm542, %v533, 0.0
        %v549 = vadd.f32 %v547, %v548
        %v550 = vand.u32 2147483647, %v522
        %v551 = vand.u32 2147483647, %v523
        %v552 = vand.u32 2147483647, %v524
        %v553 = vand.u32 2147483647, %v525
        %vm554 = vcmask 122880
        %v555 = vsel %vm554, %v550, 0.0
        %v556 = vsel %vm554, %v551, 0.0
        %v557 = vadd.f32 %v555, %v556
        %v558 = vsel %vm554, %v552, 0.0
        %v559 = vadd.f32 %v557, %v558
        %v560 = vsel %vm554, %v553, 0.0
        %v561 = vadd.f32 %v559, %v560
        %v562 = vld [vmem:[%s273] sm:$0xff]
        %v563 = vld [vmem:[%s273 + $0x8] sm:$0xff]
        %v564 = vld [vmem:[%s273 + $0x10] sm:$0xff]
        %v565 = vld [vmem:[%s273 + $0x18] sm:$0xff]
        %v566 = vld [vmem:[%s273 + $0x20] sm:$0xff]
        %v567 = vld [vmem:[%s273 + $0x28] sm:$0xff]
        %v568 = vld [vmem:[%s335] sm:$0x1]
        %v569 = vld [vmem:[%s335 + $0x1] sm:$0x1]
        %v570 = vld [vmem:[%s335 + $0x2] sm:$0x1]
        %577 = vrot.lane.b32.xlu0 %v562, 1
        %v578 = vpop.permute.xlu0 %577
        %579 = vrot.lane.b32.xlu0 %v563, 1
        %v580 = vpop.permute.xlu0 %579
        %581 = vrot.lane.b32.xlu0 %v564, 1
        %v582 = vpop.permute.xlu0 %581
        %583 = vrot.lane.b32.xlu0 %v565, 1
        %v584 = vpop.permute.xlu0 %583
        %585 = vrot.lane.b32.xlu0 %v566, 1
        %v586 = vpop.permute.xlu0 %585
        %587 = vrot.lane.b32.xlu0 %v567, 1
        %v588 = vpop.permute.xlu0 %587
        %v595 = vsub.f32 %v562, %v578
        %v596 = vsub.f32 %v563, %v580
        %v597 = vsub.f32 %v564, %v582
        %v598 = vsub.f32 %v565, %v584
        %v599 = vsub.f32 %v566, %v586
        %v600 = vsub.f32 %v567, %v588
        %v601 = vand.u32 2147483647, %v595
        %v602 = vand.u32 2147483647, %v596
        %v603 = vand.u32 2147483647, %v597
        %v604 = vand.u32 2147483647, %v598
        %v605 = vand.u32 2147483647, %v599
        %v606 = vand.u32 2147483647, %v600
        %v607 = vsel %vm406, %v601, 0.0
        %v608 = vsel %vm406, %v603, 0.0
        %v609 = vadd.f32 %v607, %v608
        %v610 = vsel %vm406, %v605, 0.0
        %v611 = vadd.f32 %v609, %v610
        %v612 = vsel %vm406, %v602, 0.0
        %v613 = vsel %vm406, %v604, 0.0
        %v614 = vadd.f32 %v612, %v613
        %v615 = vsel %vm406, %v606, 0.0
        %v616 = vadd.f32 %v614, %v615
        %v617 = vrcp.pop 3.0
        %v618 = vmul.f32 %v611, %v617
        %v619 = vmul.f32 %v616, %v617
        %v620 = vmul.f32 %v618, -10.0
        %v621 = vmul.f32 %v619, -10.0
        %v622 = vmul.f32 %v620, 1.442695
        %v623 = vpow.pop %v622
        %v624 = vmul.f32 %v621, 1.442695
        %v625 = vpow.pop %v624
        %v626 = vrot.slane %v562, 7
        %v627 = vrot.slane %v563, 7
        %v628 = vsel %vm421, %v626, %v627
        %v629 = vrot.slane %v564, 7
        %v630 = vrot.slane %v565, 7
        %v631 = vsel %vm421, %v629, %v630
        %v632 = vrot.slane %v566, 7
        %v633 = vrot.slane %v567, 7
        %v634 = vsel %vm421, %v632, %v633
        %v641 = vsub.f32 %v562, %v626
        %v642 = vsub.f32 %v563, %v628
        %v643 = vsub.f32 %v564, %v629
        %v644 = vsub.f32 %v565, %v631
        %v645 = vsub.f32 %v566, %v632
        %v646 = vsub.f32 %v567, %v634
        %v647 = vcombine.high %v563, %v563
        %v649 = vunpack.c.l.s4 1966171168
        %v650 = vunpack.c.0.s8 %v649
        %v651 = vlaneseq
        %v652 = vshrl.u32 %v651, 7
        %v653 = vsub.s32 %v650, %v652
        %v654 = vrot.slane %v647, %v653
        %v655 = vcombine.high %v654, %v654
        %v657 = vunpack.c.l.s4 1966171168
        %v658 = vunpack.c.0.s8 %v657
        %v659 = vlaneseq
        %v660 = vshrl.u32 %v659, 7
        %v661 = vsub.s32 %v658, %v660
        %v662 = vrot.slane %v655, %v661
        %v663 = vcombine.high %v662, %v662
        %v664 = vcombine.high %v565, %v565
        %v666 = vunpack.c.l.s4 1966171168
        %v667 = vunpack.c.0.s8 %v666
        %v668 = vlaneseq
        %v669 = vshrl.u32 %v668, 7
        %v670 = vsub.s32 %v667, %v669
        %v671 = vrot.slane %v664, %v670
        %v672 = vcombine.high %v671, %v671
        %v674 = vunpack.c.l.s4 1966171168
        %v675 = vunpack.c.0.s8 %v674
        %v676 = vlaneseq
        %v677 = vshrl.u32 %v676, 7
        %v678 = vsub.s32 %v675, %v677
        %v679 = vrot.slane %v672, %v678
        %v680 = vcombine.high %v679, %v679
        %v681 = vcombine.high %v567, %v567
        %v683 = vunpack.c.l.s4 1966171168
        %v684 = vunpack.c.0.s8 %v683
        %v685 = vlaneseq
        %v686 = vshrl.u32 %v685, 7
        %v687 = vsub.s32 %v684, %v686
        %v688 = vrot.slane %v681, %v687
        %v689 = vcombine.high %v688, %v688
        %v691 = vunpack.c.l.s4 1966171168
        %v692 = vunpack.c.0.s8 %v691
        %v693 = vlaneseq
        %v694 = vshrl.u32 %v693, 7
        %v695 = vsub.s32 %v692, %v694
        %v696 = vrot.slane %v689, %v695
        %v697 = vcombine.high %v696, %v696
        %v701 = vsub.f32 %v568, %v663
        %v702 = vsub.f32 %v569, %v680
        %v703 = vsub.f32 %v570, %v697
        %v704 = vand.u32 2147483647, %v641
        %v705 = vand.u32 2147483647, %v642
        %v706 = vand.u32 2147483647, %v643
        %v707 = vand.u32 2147483647, %v644
        %v708 = vand.u32 2147483647, %v645
        %v709 = vand.u32 2147483647, %v646
        %v710 = vsel %vm534, %v704, 0.0
        %v711 = vsel %vm534, %v706, 0.0
        %v712 = vadd.f32 %v710, %v711
        %v713 = vsel %vm534, %v708, 0.0
        %v714 = vadd.f32 %v712, %v713
        %v715 = vsel %vm542, %v705, 0.0
        %v716 = vsel %vm542, %v707, 0.0
        %v717 = vadd.f32 %v715, %v716
        %v718 = vsel %vm542, %v709, 0.0
        %v719 = vadd.f32 %v717, %v718
        %v720 = vmul.f32 %v714, %v617
        %v721 = vmul.f32 %v719, %v617
        %v722 = vmul.f32 %v720, -10.0
        %v723 = vmul.f32 %v721, -10.0
        %v724 = vmul.f32 %v722, 1.442695
        %v725 = vpow.pop %v724
        %v726 = vmul.f32 %v723, 1.442695
        %v727 = vpow.pop %v726
        %v728 = vand.u32 2147483647, %v701
        %v729 = vand.u32 2147483647, %v702
        %v730 = vand.u32 2147483647, %v703
        %v731 = vsel %vm554, %v728, 0.0
        %v732 = vsel %vm554, %v729, 0.0
        %v733 = vadd.f32 %v731, %v732
        %v734 = vsel %vm554, %v730, 0.0
        %v735 = vadd.f32 %v733, %v734
        %v736 = vmul.f32 %v735, %v617
        %v737 = vmul.f32 %v736, -10.0
        %v738 = vmul.f32 %v737, 1.442695
        %v739 = vpow.pop %v738
        %v740 = vmul.f32 %v623, %v413
        %v741 = vmul.f32 %v625, %v420
        %v742 = vmul.f32 %v725, %v541
        %v743 = vmul.f32 %v727, %v549
        %v744 = vmul.f32 %v739, %v561
        %v745 = vsel %vm406, %v740, 0.0
        %v746 = vsel %vm406, %v741, 0.0
        %v747 = vadd.f32 %v745, %v746
        %v748 = vrot.slane %v747, 4
        %v749 = vadd.f32 %v747, %v748
        %v750 = vrot.slane %v749, 2
        %v751 = vadd.f32 %v749, %v750
        %v752 = vrot.slane %v751, 1
        %v753 = vadd.f32 %v751, %v752
        %vm756 = vcmask 1046528
        %v757 = vrot.slane %v742, 1
        %v758 = vrot.slane %v743, 1
        %v759 = vsel %vm756, %v757, %v758
        %v762 = vsel %vm542, %v759, 0.0
        %vm763 = vcmask 129024
        %v764 = vsel %vm763, %v758, 0.0
        %v765 = vadd.f32 %v762, %v764
        %v766 = vrot.slane %v765, 4
        %v767 = vadd.f32 %v765, %v766
        %v768 = vrot.slane %v767, 2
        %v769 = vadd.f32 %v767, %v768
        %v770 = vrot.slane %v769, 1
        %v771 = vadd.f32 %v769, %v770
        %v772 = vadd.f32 %v771, %v744
        %v773 = vld [vmem:[%s339] sm:$0x1]
        %775 = vrot.lane.b32.xlu0 %v753, 127
        %v776 = vpop.permute.xlu0 %775
        %v778 = vadd.f32 %v773, %v776
        %vm779 = vcmask 114688
        %780 = vst.msk [vmem:[%s339] sm:$0x1] %vm779, %v778
        %v781 = vld [vmem:[%s339 + $0x1] sm:$0x1]
        %v782 = vadd.f32 %v781, %v772
        %783 = vst.msk [vmem:[%s339 + $0x1] sm:$0x1] %vm554, %v782
        %p784 = scmp.lt.s32.totalorder %s25, 1
        %s785 = scalar_select %p784, %s25, 1
        %s786 = smul.addr %s785, 2
        %s787 = scalar_lea.vmem %s4, %s786
        // Predicated region
        $region49: #{spatial_smooth_forward.1} parent=35 // pred_check
          %p788 = pneg %p163
        $region50: #{spatial_smooth_forward.1} parent=35 // pred_check_branch
          %790 = sbr.rel (%p788) target = $region52
        $region51: #{spatial_smooth_forward.1} parent=35 // pred_region
          _
        $region52: #{spatial_smooth_forward.1} parent=35 // pred_fallthru
          _
      $region36: #{spatial_smooth_forward.1} parent=5 // pred_fallthru
        _
      %p791 = scmp.le.s32.totalorder 2, %s16
      // Predicated region
      $region53: #{spatial_smooth_forward.1} parent=5 // pred_check
        %p792 = pneg %p791
      $region54: #{spatial_smooth_forward.1} parent=5 // pred_check_branch
        %794 = sbr.rel (%p792) target = $region56
      $region55: #{spatial_smooth_forward.1} parent=5 // pred_region
        %s795 = ssub.s32 %s16, 2
        // Predicated region
        $region57: #{spatial_smooth_forward.1} parent=55 // pred_check
          %p796 = pneg %p169
        $region58: #{spatial_smooth_forward.1} parent=55 // pred_check_branch
          %798 = sbr.rel (%p796) target = $region60
        $region59: #{spatial_smooth_forward.1} parent=55 // pred_region
          %p799 = scmp.lt.s32.totalorder %s27, 1
          %s800 = scalar_select %p799, %s27, 1
          %s801 = smul.addr %s800, 2
          %s802 = scalar_lea.vmem %s4, %s801
        $region60: #{spatial_smooth_forward.1} parent=55 // pred_fallthru
          _
      $region56: #{spatial_smooth_forward.1} parent=5 // pred_fallthru
        _
    $region6: #{spatial_smooth_forward.1} parent=1 // loop_footer
      %s20 = sadd.s32 1, %s16
    $region7: #{spatial_smooth_forward.1} parent=1 // loop_footer_branch
      %15 = sbr.rel target = $region3
    $region8: #{spatial_smooth_forward.1} parent=1 // loop_exit
      _
    %803 = vsyncpa [#allocation3], 1
    %s804 = scalar_lea.sflag [#allocation3], 1
    %805 = vsyncpa %s804, 1
    %806 = vsyncpa [#allocation5], 1
    %s807 = scalar_lea.sflag [#allocation5], 1
    %808 = vsyncpa %s807, 1

</llo_original>
